<compile_context>
chip_gen: v6e
topology: v6e:2x2x1
jax: 0.10.0
libtpu: 0.0.40
codegen_flags: <defaults>
</compile_context>

<pallas_src>
import jax
import jax.numpy as jnp
from jax.experimental import pallas as pl
from jax.experimental.pallas import tpu as pltpu


def _attention_kernel(enc_t_ref, dec_bias_ref, w_enc_ref, out_ref):
    # enc_t_ref   : (B, F, S)  encoder outputs, sequence on the lane axis
    # dec_bias_ref: (B, S)     precomputed decoder_hidden @ W_dec + bias (bcast over S)
    # w_enc_ref   : (F, 1)     encoder half of the nn.Linear weight
    # out_ref     : (B, S)     softmax attention weights (lane-dense store)
    enc_t = enc_t_ref[...]                                 # (B, F, S)
    w = w_enc_ref[...]                                     # (F, 1) -> bcast (B, F, S)

    # enc @ W_enc as a VPU multiply + sublane reduction over F (XLU).
    s_enc = jnp.sum(enc_t * w, axis=1)                     # (B, S)

    energy = jnp.tanh(s_enc + dec_bias_ref[...])           # (B, S), tanh on EUP

    # Numerically-stable softmax over the sequence (lane) axis.
    m = jnp.max(energy, axis=1, keepdims=True)             # (B, 1)
    e = jnp.exp(energy - m)                                # (B, S)
    denom = jnp.sum(e, axis=1, keepdims=True)              # (B, 1)

    # EUP approx reciprocal + one Newton refinement (f32 accuracy, no VALU divide).
    inv = pl.reciprocal(denom, approx=True)
    inv = inv * (2.0 - denom * inv)

    out_ref[...] = (e * inv).astype(out_ref.dtype)


def multi_series_attention(encoder_outputs, decoder_hidden, weight, bias):
    """Pallas implementation of MultiSeriesAttention.forward.

    encoder_outputs: (B, S, F) float32, F = hidden_size * num_directions
    decoder_hidden : (B, F)    float32
    weight         : (1, 2F)   float32  (nn.Linear weight; columns [0:F] act on
                                         decoder_hidden, [F:2F] on encoder_outputs,
                                         matching torch.cat((dec, enc), dim=2))
    bias           : (1,)      float32
    returns        : (B, S, 1) float32
    """
    B, S, F = encoder_outputs.shape
    assert decoder_hidden.shape == (B, F)
    assert weight.shape == (1, 2 * F)

    w_dec = weight[0, :F]                                   # (F,) acts on decoder_hidden
    w_enc = weight[0, F:]                                   # (F,) acts on encoder_outputs

    # Hoisted decoder contribution + bias: a (B,)-sized op, trivially cheap in JAX.
    dec_bias = decoder_hidden @ w_dec + bias[0]             # (B,)
    dec_bias_bs = jnp.broadcast_to(dec_bias[:, None], (B, S)).astype(jnp.float32)

    # Sequence axis onto lanes for the kernel.
    enc_t = jnp.transpose(encoder_outputs, (0, 2, 1))       # (B, F, S)
    w_enc_col = w_enc.reshape(F, 1).astype(jnp.float32)     # (F, 1)

    out2d = pl.pallas_call(
        _attention_kernel,
        out_shape=jax.ShapeDtypeStruct((B, S), encoder_outputs.dtype),
        in_specs=[
            pl.BlockSpec(memory_space=pltpu.MemorySpace.VMEM),   # enc_t (full array)
            pl.BlockSpec(memory_space=pltpu.MemorySpace.VMEM),   # dec_bias
            pl.BlockSpec(memory_space=pltpu.MemorySpace.VMEM),   # w_enc
        ],
        out_specs=pl.BlockSpec(memory_space=pltpu.MemorySpace.VMEM),
    )(enc_t, dec_bias_bs, w_enc_col)

    # Restore the module's (B, S, 1) output shape (free reshape in the wrapper).
    return out2d[:, :, None]


def _reference(encoder_outputs, decoder_hidden, weight, bias):
    B, S, F = encoder_outputs.shape
    dec_exp = jnp.broadcast_to(decoder_hidden[:, None, :], (B, S, F))
    cat = jnp.concatenate([dec_exp, encoder_outputs], axis=2)          # (B, S, 2F)
    energy = jnp.tanh(jnp.einsum("bsk,ok->bso", cat, weight) + bias)   # (B, S, 1)
    return jax.nn.softmax(energy, axis=1)


if __name__ == "__main__":
    hidden_size = 16
    num_directions = 2
    F = hidden_size * num_directions          # 32
    B, S = 2, 8

    key = jax.random.PRNGKey(0)
    k_enc, k_dec, k_w, k_b = jax.random.split(key, 4)

    encoder_outputs = jax.random.normal(k_enc, (B, S, F), dtype=jnp.float32)
    decoder_hidden = jax.random.normal(k_dec, (B, F), dtype=jnp.float32)

    # Deterministic parameter init for nn.Linear(2F, 1): weight (1, 2F), bias (1,)
    bound = 1.0 / jnp.sqrt(jnp.float32(2 * F))
    weight = jax.random.uniform(k_w, (1, 2 * F), jnp.float32, -bound, bound)
    bias = jax.random.uniform(k_b, (1,), jnp.float32, -bound, bound)

    out = multi_series_attention(encoder_outputs, decoder_hidden, weight, bias)
    out = jax.block_until_ready(out)

    ref = _reference(encoder_outputs, decoder_hidden, weight, bias)
    assert out.shape == (B, S, 1)
    # Tolerance allows for the EUP approx-reciprocal + Newton-step normalization.
    assert jnp.allclose(out, ref, atol=1e-4, rtol=1e-4), "mismatch vs reference"

    print("KERNEL_OK")
</pallas_src>

<mosaic_0001>
module attributes {stable_mosaic.version = 11 : i64} {
  func.func @_attention_kernel(%arg0: memref<2x32x8xf32, #tpu.memory_space<vmem>>, %arg1: memref<2x8xf32, #tpu.memory_space<vmem>>, %arg2: memref<32x1xf32, #tpu.memory_space<vmem>>, %arg3: memref<2x8xf32, #tpu.memory_space<vmem>>) attributes {dimension_semantics = [], scalar_prefetch = 0 : i64, scratch_operands = 0 : i64, tpu.core_type = #tpu.core_type<tc>} {
    %c0 = arith.constant 0 : index
    %c0_0 = arith.constant 0 : index
    %c0_1 = arith.constant 0 : index
    %0 = vector.load %arg0[%c0, %c0_0, %c0_1] : memref<2x32x8xf32, #tpu.memory_space<vmem>>, vector<2x32x8xf32>
    %c0_2 = arith.constant 0 : index
    %c0_3 = arith.constant 0 : index
    %1 = vector.load %arg2[%c0_2, %c0_3] : memref<32x1xf32, #tpu.memory_space<vmem>>, vector<32x1xf32>
    %2 = vector.shape_cast %1 : vector<32x1xf32> to vector<1x32x1xf32>
    %3 = vector.broadcast %2 : vector<1x32x1xf32> to vector<2x32x8xf32>
    %4 = arith.mulf %0, %3 : vector<2x32x8xf32>
    %cst = arith.constant dense<0.000000e+00> : vector<2x8xf32>
    %5 = vector.multi_reduction <add>, %4, %cst [1] : vector<2x32x8xf32> to vector<2x8xf32>
    %c0_4 = arith.constant 0 : index
    %c0_5 = arith.constant 0 : index
    %6 = vector.load %arg1[%c0_4, %c0_5] : memref<2x8xf32, #tpu.memory_space<vmem>>, vector<2x8xf32>
    %7 = arith.addf %5, %6 : vector<2x8xf32>
    %8 = math.tanh %7 : vector<2x8xf32>
    %cst_6 = arith.constant dense<0xFF800000> : vector<2xf32>
    %9 = vector.multi_reduction <maximumf>, %8, %cst_6 [1] : vector<2x8xf32> to vector<2xf32>
    %10 = vector.shape_cast %9 : vector<2xf32> to vector<2x1xf32>
    %11 = vector.broadcast %10 : vector<2x1xf32> to vector<2x8xf32>
    %12 = arith.subf %8, %11 : vector<2x8xf32>
    %13 = math.exp %12 : vector<2x8xf32>
    %cst_7 = arith.constant dense<0.000000e+00> : vector<2xf32>
    %14 = vector.multi_reduction <add>, %13, %cst_7 [1] : vector<2x8xf32> to vector<2xf32>
    %15 = vector.shape_cast %14 : vector<2xf32> to vector<2x1xf32>
    %16 = tpu.reciprocal %15 {approx = true} : vector<2x1xf32> -> vector<2x1xf32>
    %17 = arith.mulf %15, %16 : vector<2x1xf32>
    %cst_8 = arith.constant 2.000000e+00 : f32
    %18 = vector.broadcast %cst_8 : f32 to vector<2x1xf32>
    %19 = arith.subf %18, %17 : vector<2x1xf32>
    %20 = arith.mulf %16, %19 : vector<2x1xf32>
    %21 = vector.broadcast %20 : vector<2x1xf32> to vector<2x8xf32>
    %22 = arith.mulf %13, %21 : vector<2x8xf32>
    %c0_9 = arith.constant 0 : index
    %c0_10 = arith.constant 0 : index
    %23 = vector.load %arg3[%c0_9, %c0_10] : memref<2x8xf32, #tpu.memory_space<vmem>>, vector<2x8xf32>
    tpu.vector_store %arg3[%c0_9, %c0_10], %22 {strides = array<i32>} : memref<2x8xf32, #tpu.memory_space<vmem>>, vector<2x8xf32>,
    return
  }
}

</mosaic_0001>

<llo_original>
// kernel: tpu_custom_call.1
$region0: #{tpu_custom_call.1}
  #allocation0 [shape = 'u32[]', space=smem, size = 0x4, offset = 0x4, fixed_abs, tag = 'smem constant byte address 0x4 - core index']
  #allocation1 [shape = 'u32[144,128]{1,0:T(1,128)}', space=vmem, size = 0x12000, scoped, tag = 'internal scratch']
  %s0 = inlined_call_operand.vmem [shape: f32[2,32,8], index: 0, kind: input, shape index: {}]
  %s1 = inlined_call_operand.vmem [shape: f32[2,8], index: 1, kind: input, shape index: {}]
  %s2 = inlined_call_operand.vmem [shape: f32[32,1], index: 2, kind: input, shape index: {}]
  %s3 = inlined_call_operand.hbm [shape: f32[2,8], index: 3, kind: output, shape index: {}]
  %s4 = sld [smem:[#allocation0]]
  $region22: #{tpu_custom_call.1} parent=0
    _
  %s6 = ssub.s32 1, %s4
  %s7 = scalar_select 0, %s6, %s4
  $region1: #{tpu_custom_call.1} parent=0
    #allocation2 [shape = 'u8[1024]{0}', space=vmem, size = 0x400, scoped, tag = 'output window, operand 0, single buffered']
    #allocation3 [shape = 's32[1]{0}', space=sflag, size = 0x4, scoped, tag = 'scoped memory for tpu_custom_call.1']
    %8 = vsyncpa [#allocation3], 0
    // Predicated region
    $region2: #{tpu_custom_call.1} parent=1 // pred_check
      _
    $region3: #{tpu_custom_call.1} parent=1 // pred_check_branch
      %10 = sbr.rel (0) target = $region5
    $region4: #{tpu_custom_call.1} parent=1 // pred_region
      _
    $region5: #{tpu_custom_call.1} parent=1 // pred_fallthru
      _
    // Predicated region
    $region6: #{tpu_custom_call.1} parent=1 // pred_check
      _
    $region7: #{tpu_custom_call.1} parent=1 // pred_check_branch
      %12 = sbr.rel (0) target = $region9
    $region8: #{tpu_custom_call.1} parent=1 // pred_region
      _
    $region9: #{tpu_custom_call.1} parent=1 // pred_fallthru
      _
    // Predicated region
    $region10: #{tpu_custom_call.1} parent=1 // pred_check
      _
    $region11: #{tpu_custom_call.1} parent=1 // pred_check_branch
      %14 = sbr.rel (0) target = $region13
    $region12: #{tpu_custom_call.1} parent=1 // pred_region
      _
    $region13: #{tpu_custom_call.1} parent=1 // pred_fallthru
      _
    %v15 = vld [vmem:[%s0] sm:$0xff]
    %v16 = vld [vmem:[%s0 + $0x8] sm:$0xff]
    %v17 = vld [vmem:[%s0 + $0x10] sm:$0xff]
    %v18 = vld [vmem:[%s0 + $0x18] sm:$0xff]
    %v19 = vld [vmem:[%s0 + $0x20] sm:$0xff]
    %v20 = vld [vmem:[%s0 + $0x28] sm:$0xff]
    %v21 = vld [vmem:[%s0 + $0x30] sm:$0xff]
    %v22 = vld [vmem:[%s0 + $0x38] sm:$0xff]
    %v23 = vld [vmem:[%s2] sm:$0xff]
    %v24 = vld [vmem:[%s2 + $0x8] sm:$0xff]
    %v25 = vld [vmem:[%s2 + $0x10] sm:$0xff]
    %v26 = vld [vmem:[%s2 + $0x18] sm:$0xff]
    %28 = vset.pattern.permute.xlu0 0
    %29 = vperm.xlu0 %28, %v23
    %v30 = vpop.permute.xlu0 %29
    %33 = vset.pattern.permute.xlu0 0
    %34 = vperm.xlu0 %33, %v24
    %v35 = vpop.permute.xlu0 %34
    %38 = vset.pattern.permute.xlu0 0
    %39 = vperm.xlu0 %38, %v25
    %v40 = vpop.permute.xlu0 %39
    %43 = vset.pattern.permute.xlu0 0
    %44 = vperm.xlu0 %43, %v26
    %v45 = vpop.permute.xlu0 %44
    %v47 = vmul.f32 %v15, %v30
    %v48 = vmul.f32 %v16, %v35
    %v49 = vmul.f32 %v17, %v40
    %v50 = vmul.f32 %v18, %v45
    %v51 = vmul.f32 %v19, %v30
    %v52 = vmul.f32 %v20, %v35
    %v53 = vmul.f32 %v21, %v40
    %v54 = vmul.f32 %v22, %v45
    %vm55 = vcmask 64512
    %v56 = vsel %vm55, %v47, 0.0
    %v57 = vsel %vm55, %v48, 0.0
    %v58 = vadd.f32 %v56, %v57
    %v59 = vsel %vm55, %v49, 0.0
    %v60 = vadd.f32 %v58, %v59
    %v61 = vsel %vm55, %v50, 0.0
    %v62 = vadd.f32 %v60, %v61
    %v63 = vrot.slane %v62, 4
    %v64 = vadd.f32 %v62, %v63
    %v65 = vrot.slane %v64, 2
    %v66 = vadd.f32 %v64, %v65
    %v67 = vrot.slane %v66, 1
    %v68 = vadd.f32 %v66, %v67
    %v69 = vsel %vm55, %v51, 0.0
    %v70 = vsel %vm55, %v52, 0.0
    %v71 = vadd.f32 %v69, %v70
    %v72 = vsel %vm55, %v53, 0.0
    %v73 = vadd.f32 %v71, %v72
    %v74 = vsel %vm55, %v54, 0.0
    %v75 = vadd.f32 %v73, %v74
    %v76 = vrot.slane %v75, 4
    %v77 = vadd.f32 %v75, %v76
    %v78 = vrot.slane %v77, 2
    %v79 = vadd.f32 %v77, %v78
    %v80 = vrot.slane %v79, 1
    %v81 = vadd.f32 %v79, %v80
    %v82 = vld [vmem:[%s1] sm:$0x3]
    %v84 = vrot.slane %v82, 1
    %v87 = vadd.f32 %v68, %v82
    %v88 = vadd.f32 %v81, %v84
    %v89 = vtanh.pop %v87
    %v90 = vtanh.pop %v88
    %v93 = vrot.slane %v90, 7
    %vm94 = vcmask 1041409
    %v95 = vsel %vm94, %v93, %v89
    %vm97 = vcmask 58368
    %v98 = vsel %vm97, %v95, -inf
    %99 = vmax.xlane.f32.xlu0 %v98
    %v100 = vpop.xlane.xlu0 %99
    %v102 = vrot.slane %v100, 1
    %v105 = vsub.f32 %v89, %v100
    %v106 = vsub.f32 %v90, %v102
    %v107 = vmul.f32 %v105, 1.442695
    %v108 = vpow.pop %v107
    %v109 = vmul.f32 %v106, 1.442695
    %v110 = vpow.pop %v109
    %v113 = vrot.slane %v110, 7
    %v114 = vsel %vm94, %v113, %v108
    %v116 = vsel %vm97, %v114, 0.0
    %117 = vadd.xlane.f32.xlu0 %v116
    %v118 = vpop.xlane.xlu0 %117
    %v119 = vrcp.pop %v118
    %v120 = vmul.f32 %v118, %v119
    %v121 = vsub.f32 2.0, %v120
    %v122 = vmul.f32 %v119, %v121
    %v124 = vrot.slane %v122, 1
    %v127 = vmul.f32 %v108, %v122
    %v128 = vmul.f32 %v110, %v124
    %v131 = vrot.slane %v128, 7
    %v132 = vsel %vm94, %v131, %v127
    %134 = vst.msk [vmem:[#allocation2] sm:$0x3] %vm97, %v132
    // Predicated region
    $region14: #{tpu_custom_call.1} parent=1 // pred_check
      _
    $region15: #{tpu_custom_call.1} parent=1 // pred_check_branch
      %136 = sbr.rel (0) target = $region17
    $region16: #{tpu_custom_call.1} parent=1 // pred_region
      %s138 = ssub.s32 32, 32
      %139 = vsyncadd [#allocation3], %s138
      %s141 = sshll.u32 [#allocation2], 4
      %s142 = int_to_ptr.vmem [resolvable:$true] %s141
      %144 = dma.vmem_to_hbm [thread:$0]  %s142, 32, %s3, [#allocation3]
    $region17: #{tpu_custom_call.1} parent=1 // pred_fallthru
      _
    // Predicated region
    $region18: #{tpu_custom_call.1} parent=1 // pred_check
      _
    $region19: #{tpu_custom_call.1} parent=1 // pred_check_branch
      %146 = sbr.rel (0) target = $region21
    $region20: #{tpu_custom_call.1} parent=1 // pred_region
      %147 = dma.done [#allocation3], 32
    $region21: #{tpu_custom_call.1} parent=1 // pred_fallthru
      _
    %148 = vsyncpa [#allocation3], 1

</llo_original>
